<compile_context>
chip_gen: v7x
topology: tpu7x:2x2x1
jax: 0.10.0
libtpu: 0.0.40
codegen_flags: <defaults>
</compile_context>

<pallas_src>
import numpy as np
import jax
import jax.numpy as jnp
from jax import lax
from jax.experimental import pallas as pl
from jax.experimental.pallas import tpu as pltpu

# ---- matcher / loss hyper-parameters (mirror Args below) -------------------
FOCAL_ALPHA = 0.25
FOCAL_GAMMA = 2.0          # gamma == 2 -> explicit squares in the kernel
COST_CLASS = 2.0
COST_BBOX = 5.0
COST_GIOU = 2.0
_EPS = 1e-8


def _giou(qx0, qy0, qx1, qy1, tx0, ty0, tx1, ty1):
    """Generalized IoU with broadcasting; eps-guarded, approx reciprocals."""
    area_q = (qx1 - qx0) * (qy1 - qy0)
    area_t = (tx1 - tx0) * (ty1 - ty0)
    ix0 = jnp.maximum(qx0, tx0)
    iy0 = jnp.maximum(qy0, ty0)
    ix1 = jnp.minimum(qx1, tx1)
    iy1 = jnp.minimum(qy1, ty1)
    inter = jnp.maximum(ix1 - ix0, 0.0) * jnp.maximum(iy1 - iy0, 0.0)
    union = area_q + area_t - inter
    iou = inter * pl.reciprocal(union + _EPS, approx=True)
    ex0 = jnp.minimum(qx0, tx0)
    ey0 = jnp.minimum(qy0, ty0)
    ex1 = jnp.maximum(qx1, tx1)
    ey1 = jnp.maximum(qy1, ty1)
    area_c = (ex1 - ex0) * (ey1 - ey0)
    return iou - (area_c - union) * pl.reciprocal(area_c + _EPS, approx=True)


# ---------------------------------------------------------------------------
# Fused kernel: pairwise cost + greedy matching + focal CE / L1 / GIoU losses
# One grid step per (decoder layer, (batch, class) element).
# ---------------------------------------------------------------------------
def _criterion_kernel(ntgt_ref, logits_ref, qboxT_ref, tbox_ref,
                      ce_ref, l1_ref, giou_ref):
    # ntgt_ref  : (cs,)   SMEM int32, number of valid (non-padded) targets
    # logits_ref: (1, nq) classification logits (single class), queries on lanes
    # qboxT_ref : (4, nq) predicted boxes, coordinate-major cxcywh
    # tbox_ref  : (nt, 4) target boxes, cxcywh (zero-padded to nt rows)
    # ce/l1/giou_ref : (1, 1) per-layer accumulators, resident across the cs axis
    c = pl.program_id(1)

    @pl.when(c == 0)
    def _init():
        ce_ref[...] = jnp.zeros_like(ce_ref)
        l1_ref[...] = jnp.zeros_like(l1_ref)
        giou_ref[...] = jnp.zeros_like(giou_ref)

    nq = logits_ref.shape[1]
    nt = tbox_ref.shape[0]
    n_valid = ntgt_ref[c]                                   # int32 scalar (SMEM)

    x = logits_ref[...]                                     # (1, nq)
    p = jax.nn.sigmoid(x)

    # Focal matching cost: computed once per query, broadcasts over nt targets.
    neg_cost = (1.0 - FOCAL_ALPHA) * (p * p) * (-jnp.log(1.0 - p + _EPS))
    pos_cost = FOCAL_ALPHA * ((1.0 - p) * (1.0 - p)) * (-jnp.log(p + _EPS))
    cost_class = pos_cost - neg_cost                        # (1, nq)

    qcx = qboxT_ref[0:1, :]
    qcy = qboxT_ref[1:2, :]
    qw = qboxT_ref[2:3, :]
    qh = qboxT_ref[3:4, :]
    tcx = tbox_ref[:, 0:1]
    tcy = tbox_ref[:, 1:2]
    tw = tbox_ref[:, 2:3]
    th = tbox_ref[:, 3:4]

    # Pairwise L1 cdist between cxcywh boxes: (nt, nq), targets on sublanes,
    # queries on lanes (lane-dense along nq).
    l1_pair = (jnp.abs(tcx - qcx) + jnp.abs(tcy - qcy)
               + jnp.abs(tw - qw) + jnp.abs(th - qh))

    qx0, qy0 = qcx - 0.5 * qw, qcy - 0.5 * qh
    qx1, qy1 = qcx + 0.5 * qw, qcy + 0.5 * qh
    tx0, ty0 = tcx - 0.5 * tw, tcy - 0.5 * th
    tx1, ty1 = tcx + 0.5 * tw, tcy + 0.5 * th
    giou_pair = _giou(qx0, qy0, qx1, qy1, tx0, ty0, tx1, ty1)   # (nt, nq)

    cost = (COST_BBOX * l1_pair + COST_CLASS * cost_class
            - COST_GIOU * giou_pair)                            # (nt, nq)

    # Greedy conflict-free per-target argmin matching, unrolled (nt is small
    # and static; padded rows come last so they cannot steal valid queries).
    # TODO(synk): exact Hungarian (scipy linear_sum_assignment) has no clean
    # Pallas/JAX equivalent; greedy per-target argmin is used instead.
    qiota = lax.broadcasted_iota(jnp.int32, (1, nq), 1).astype(jnp.float32)
    taken = jnp.zeros((1, nq), jnp.float32)
    labels = jnp.zeros((1, nq), jnp.float32)
    l1_acc = jnp.zeros((1, 1), jnp.float32)
    gi_acc = jnp.zeros((1, 1), jnp.float32)
    for j in range(nt):
        valid = (j < n_valid).astype(jnp.float32)           # scalar 0/1
        row = cost[j:j + 1, :] + taken * 1e9                # (1, nq)
        m = jnp.min(row, axis=-1, keepdims=True)            # (1, 1)
        cand = jnp.where(row <= m, qiota, jnp.float32(nq))
        qidx = jnp.min(cand, axis=-1, keepdims=True)        # first argmin
        sel = (qiota == qidx).astype(jnp.float32)           # (1, nq) one-hot
        taken = taken + sel
        labels = labels + sel * valid
        l1_acc = l1_acc + valid * jnp.sum(
            sel * l1_pair[j:j + 1, :], axis=-1, keepdims=True)
        gi_acc = gi_acc + valid * (1.0 - jnp.sum(
            sel * giou_pair[j:j + 1, :], axis=-1, keepdims=True))

    # Sigmoid focal classification loss over all queries of this element.
    t = labels
    bce = jnp.maximum(x, 0.0) - x * t + jnp.log(1.0 + jnp.exp(-jnp.abs(x)))
    p_t = p * t + (1.0 - p) * (1.0 - t)
    alpha_t = FOCAL_ALPHA * t + (1.0 - FOCAL_ALPHA) * (1.0 - t)
    focal = alpha_t * bce * ((1.0 - p_t) * (1.0 - p_t))

    ce_ref[...] += jnp.sum(focal, axis=-1, keepdims=True)
    l1_ref[...] += l1_acc
    giou_ref[...] += gi_acc


@jax.jit
def _classwise_losses(all_logits, all_boxes, tgt_boxes, ntgt, num_boxes):
    """all_logits: (L, cs, nq, 1); all_boxes: (L, cs, nq, 4);
       tgt_boxes: (cs, nt, 4); ntgt: (cs,) int32; num_boxes: f32 scalar."""
    L, cs, nq, _ = all_logits.shape
    nt = tgt_boxes.shape[1]

    logits_t = jnp.transpose(all_logits.astype(jnp.float32), (0, 1, 3, 2))  # (L,cs,1,nq)
    qbox_t = jnp.transpose(all_boxes.astype(jnp.float32), (0, 1, 3, 2))     # (L,cs,4,nq)
    tb = tgt_boxes.astype(jnp.float32)                                      # (cs,nt,4)

    ce, l1, gi = pl.pallas_call(
        _criterion_kernel,
        out_shape=(jax.ShapeDtypeStruct((L, 1, 1), jnp.float32),) * 3,
        grid_spec=pltpu.PrefetchScalarGridSpec(
            num_scalar_prefetch=1,
            grid=(L, cs),
            in_specs=[
                pl.BlockSpec((None, None, 1, nq), lambda l, c, n: (l, c, 0, 0)),
                pl.BlockSpec((None, None, 4, nq), lambda l, c, n: (l, c, 0, 0)),
                pl.BlockSpec((None, nt, 4), lambda l, c, n: (c, 0, 0)),
            ],
            out_specs=[
                pl.BlockSpec((None, 1, 1), lambda l, c, n: (l, 0, 0)),
                pl.BlockSpec((None, 1, 1), lambda l, c, n: (l, 0, 0)),
                pl.BlockSpec((None, 1, 1), lambda l, c, n: (l, 0, 0)),
            ],
        ),
        compiler_params=pltpu.CompilerParams(
            dimension_semantics=("parallel", "arbitrary")),
    )(ntgt, logits_t, qbox_t, tb)

    nb = num_boxes.astype(jnp.float32)
    return ce[:, 0, 0] / nb, l1[:, 0, 0] / nb, gi[:, 0, 0] / nb


# ---------------------------------------------------------------------------
# ClasswiseCriterion
# ---------------------------------------------------------------------------
class Args:
    use_dn = True
    num_classes_for_CEM = 0          # != 20 -> CEM branch inactive (as in torch)
    retention_policy_train_max_classes = 4
    dec_layers = 3
    set_cost_class = COST_CLASS
    set_cost_bbox = COST_BBOX
    set_cost_giou = COST_GIOU
    train_topk = 20
    focal_alpha = FOCAL_ALPHA


class ClasswiseCriterion:
    def __init__(self, args, weight_dict=None):
        self.weight_dict = weight_dict or {}
        self.use_cdn = args.use_dn
        self.num_classes_for_CEM = args.num_classes_for_CEM
        self.num_classes = args.retention_policy_train_max_classes
        self.num_decoder_layers = args.dec_layers
        # TODO(synk): CEM SetCriterion branch (num_classes_for_CEM == 20) and the
        # cdn positive/negative-index branch are not exercised in this synthetic
        # config (dn_meta is None), matching the torch control flow for it.

    def get_num_boxes(self, target_for_class):
        n = sum(sum(t[key]["boxes"].shape[0] for key in t if isinstance(key, int))
                for t in target_for_class)
        return float(max(n, 1))      # world_size == 1, clamp(min=1)

    def __call__(self, output, targets, target_for_class):
        num_boxes = self.get_num_boxes(target_for_class)
        bs_idx = np.asarray(output["batch_index"])
        cls_idx = np.asarray(output["class_index"])

        counts = [target_for_class[b][c]["boxes"].shape[0]
                  for b in range(len(target_for_class))
                  for c in target_for_class[b]]
        nt = max(max(counts) if counts else 1, 1)

        tgt_list, nvalid = [], []
        for id_b, id_c in zip(bs_idx, cls_idx):
            id_b, id_c = int(id_b), int(id_c)
            if id_c in target_for_class[id_b]:
                b = np.asarray(target_for_class[id_b][id_c]["boxes"], np.float32)
            else:
                b = np.zeros((0, 4), np.float32)   # default [0, 4] target
            nvalid.append(b.shape[0])
            pad = np.zeros((nt - b.shape[0], 4), np.float32)
            tgt_list.append(np.concatenate([b, pad], 0))
        tgt_boxes = jnp.asarray(np.stack(tgt_list, 0))          # (cs, nt, 4)
        ntgt = jnp.asarray(np.asarray(nvalid, np.int32))        # (cs,)

        # TODO(synk): UnifiedSingleClassCriterion source is not provided;
        # standard DETR single-class losses (sigmoid focal CE, L1, GIoU) with
        # bipartite matching are implemented (padded targets fully masked).
        aux = output["aux_outputs"]
        all_logits = jnp.stack(
            [a["pred_logits"] for a in aux] + [output["pred_logits"]], 0)
        all_boxes = jnp.stack(
            [a["pred_boxes"] for a in aux] + [output["pred_boxes"]], 0)

        ce, l1, gi = _classwise_losses(
            all_logits, all_boxes, tgt_boxes, ntgt,
            jnp.asarray(num_boxes, jnp.float32))

        losses = {}
        L = all_logits.shape[0]
        for i in range(L - 1):                                  # aux heads
            losses[f"loss_ce_{i}"] = ce[i]
            losses[f"loss_bbox_{i}"] = l1[i]
            losses[f"loss_giou_{i}"] = gi[i]
        losses["loss_ce"] = ce[L - 1]                           # final head
        losses["loss_bbox"] = l1[L - 1]
        losses["loss_giou"] = gi[L - 1]

        if self.use_cdn:
            dn_meta = output.get("dn_meta", None)
            if not (dn_meta and "output_known_lbs_bboxes" in dn_meta):
                zero = jnp.zeros((), jnp.float32)
                losses.update({"loss_bbox_dn": zero, "loss_giou_dn": zero,
                               "loss_ce_dn": zero})
                for idx in range(self.num_decoder_layers - 1):
                    losses.update({f"loss_bbox_dn_{idx}": zero,
                                   f"loss_giou_dn_{idx}": zero,
                                   f"loss_ce_dn_{idx}": zero})
        return losses


# ---------------------------------------------------------------------------
if __name__ == "__main__":
    key = jax.random.PRNGKey(0)
    bs = 2                 # images
    classes_per_img = 2    # retained classes per image
    cs = bs * classes_per_img
    nq = 8                 # queries per (image, class) element
    nt = 2                 # ground-truth boxes per (image, class)
    args = Args()

    keys = jax.random.split(key, 16)

    def rand_boxes(k, shape):
        cxcy = jax.random.uniform(k, shape[:-1] + (2,), minval=0.2, maxval=0.8)
        wh = jax.random.uniform(jax.random.fold_in(k, 1), shape[:-1] + (2,),
                                minval=0.05, maxval=0.3)
        return jnp.concatenate([cxcy, wh], axis=-1).astype(jnp.float32)

    def rand_layer(k):
        return {"pred_logits": jax.random.normal(k, (cs, nq, 1), jnp.float32),
                "pred_boxes": rand_boxes(jax.random.fold_in(k, 7), (cs, nq, 4))}

    output = rand_layer(keys[0])
    output["aux_outputs"] = [rand_layer(keys[1 + i])
                             for i in range(args.dec_layers - 1)]
    output["batch_index"] = jnp.repeat(jnp.arange(bs), classes_per_img)
    output["class_index"] = jnp.tile(jnp.arange(classes_per_img), bs)
    output["dn_meta"] = None

    target_for_class = []
    targets = []
    for b in range(bs):
        per_class = {}
        labels, all_boxes = [], []
        for c in range(classes_per_img):
            bx = rand_boxes(keys[8 + 2 * b + c], (nt, 4))
            per_class[c] = {"boxes": bx}
            labels += [c] * nt
            all_boxes.append(bx)
        target_for_class.append(per_class)
        targets.append({"labels": jnp.asarray(labels, jnp.int32),
                        "boxes": jnp.concatenate(all_boxes, 0)})

    crit = ClasswiseCriterion(args)
    losses = crit(output, targets, target_for_class)
    losses = jax.tree_util.tree_map(jax.block_until_ready, losses)

    for name, v in losses.items():
        assert bool(jnp.isfinite(v).all()), f"non-finite loss {name}"

    print("KERNEL_OK")
</pallas_src>

<mosaic_0001>
module attributes {stable_mosaic.version = 11 : i64} {
  func.func @_criterion_kernel(%arg0: i32, %arg1: i32, %arg2: memref<4xi32, #tpu.memory_space<smem>>, %arg3: memref<1x1x1x8xf32, #tpu.memory_space<vmem>>, %arg4: memref<1x1x4x8xf32, #tpu.memory_space<vmem>>, %arg5: memref<1x2x4xf32, #tpu.memory_space<vmem>>, %arg6: memref<1x1x1xf32, #tpu.memory_space<vmem>>, %arg7: memref<1x1x1xf32, #tpu.memory_space<vmem>>, %arg8: memref<1x1x1xf32, #tpu.memory_space<vmem>>) attributes {dimension_semantics = [#tpu.dimension_semantics<parallel>, #tpu.dimension_semantics<arbitrary>], iteration_bounds = array<i64: 3, 4>, scalar_prefetch = 1 : i64, scratch_operands = 0 : i64, tpu.core_type = #tpu.core_type<tc>, window_params = [{transform_indices = @transform_0, window_bounds = array<i64: 1, 1, 1, 8>}, {transform_indices = @transform_1, window_bounds = array<i64: 1, 1, 4, 8>}, {transform_indices = @transform_2, window_bounds = array<i64: 1, 2, 4>}, {transform_indices = @transform_3, window_bounds = array<i64: 1, 1, 1>}, {transform_indices = @transform_4, window_bounds = array<i64: 1, 1, 1>}, {transform_indices = @transform_5, window_bounds = array<i64: 1, 1, 1>}]} {
    %c0_i32 = arith.constant 0 : i32
    %0 = arith.cmpi eq, %arg1, %c0_i32 : i32
    %1 = arith.extui %0 : i1 to i32
    %c0_i32_0 = arith.constant 0 : i32
    %2 = arith.cmpi ne, %1, %c0_i32_0 : i32
    scf.if %2 {
      %cst_101 = arith.constant 0.000000e+00 : f32
      %295 = vector.broadcast %cst_101 : f32 to vector<1x1xf32>
      %c0_102 = arith.constant 0 : index
      %c0_103 = arith.constant 0 : index
      %c0_104 = arith.constant 0 : index
      %296 = vector.load %arg6[%c0_102, %c0_103, %c0_104] : memref<1x1x1xf32, #tpu.memory_space<vmem>>, vector<1x1x1xf32>
      %297 = vector.shape_cast %296 : vector<1x1x1xf32> to vector<1x1xf32>
      %298 = vector.shape_cast %295 : vector<1x1xf32> to vector<1x1x1xf32>
      tpu.vector_store %arg6[%c0_102, %c0_103, %c0_104], %298 {strides = array<i32>} : memref<1x1x1xf32, #tpu.memory_space<vmem>>, vector<1x1x1xf32>,
      %cst_105 = arith.constant 0.000000e+00 : f32
      %299 = vector.broadcast %cst_105 : f32 to vector<1x1xf32>
      %c0_106 = arith.constant 0 : index
      %c0_107 = arith.constant 0 : index
      %c0_108 = arith.constant 0 : index
      %300 = vector.load %arg7[%c0_106, %c0_107, %c0_108] : memref<1x1x1xf32, #tpu.memory_space<vmem>>, vector<1x1x1xf32>
      %301 = vector.shape_cast %300 : vector<1x1x1xf32> to vector<1x1xf32>
      %302 = vector.shape_cast %299 : vector<1x1xf32> to vector<1x1x1xf32>
      tpu.vector_store %arg7[%c0_106, %c0_107, %c0_108], %302 {strides = array<i32>} : memref<1x1x1xf32, #tpu.memory_space<vmem>>, vector<1x1x1xf32>,
      %cst_109 = arith.constant 0.000000e+00 : f32
      %303 = vector.broadcast %cst_109 : f32 to vector<1x1xf32>
      %c0_110 = arith.constant 0 : index
      %c0_111 = arith.constant 0 : index
      %c0_112 = arith.constant 0 : index
      %304 = vector.load %arg8[%c0_110, %c0_111, %c0_112] : memref<1x1x1xf32, #tpu.memory_space<vmem>>, vector<1x1x1xf32>
      %305 = vector.shape_cast %304 : vector<1x1x1xf32> to vector<1x1xf32>
      %306 = vector.shape_cast %303 : vector<1x1xf32> to vector<1x1x1xf32>
      tpu.vector_store %arg8[%c0_110, %c0_111, %c0_112], %306 {strides = array<i32>} : memref<1x1x1xf32, #tpu.memory_space<vmem>>, vector<1x1x1xf32>,
    } else {
    }
    %3 = arith.index_cast %arg1 : i32 to index
    %4 = memref.load %arg2[%3] : memref<4xi32, #tpu.memory_space<smem>>
    %c0 = arith.constant 0 : index
    %c0_1 = arith.constant 0 : index
    %c0_2 = arith.constant 0 : index
    %c0_3 = arith.constant 0 : index
    %5 = vector.load %arg3[%c0, %c0_1, %c0_2, %c0_3] : memref<1x1x1x8xf32, #tpu.memory_space<vmem>>, vector<1x1x1x8xf32>
    %6 = vector.shape_cast %5 : vector<1x1x1x8xf32> to vector<1x8xf32>
    %7 = arith.negf %6 : vector<1x8xf32>
    %8 = math.exp %7 : vector<1x8xf32>
    %cst = arith.constant 1.000000e+00 : f32
    %9 = vector.broadcast %cst : f32 to vector<1x8xf32>
    %10 = arith.addf %9, %8 : vector<1x8xf32>
    %11 = arith.divf %9, %10 : vector<1x8xf32>
    %12 = arith.mulf %11, %11 : vector<1x8xf32>
    %cst_4 = arith.constant 7.500000e-01 : f32
    %13 = vector.broadcast %cst_4 : f32 to vector<1x8xf32>
    %14 = arith.mulf %13, %12 : vector<1x8xf32>
    %cst_5 = arith.constant 1.000000e+00 : f32
    %15 = vector.broadcast %cst_5 : f32 to vector<1x8xf32>
    %16 = arith.subf %15, %11 : vector<1x8xf32>
    %cst_6 = arith.constant 9.99999993E-9 : f32
    %17 = vector.broadcast %cst_6 : f32 to vector<1x8xf32>
    %18 = arith.addf %16, %17 : vector<1x8xf32>
    %19 = math.log %18 : vector<1x8xf32>
    %cst_7 = arith.constant 0.000000e+00 : f32
    %20 = vector.broadcast %cst_7 : f32 to vector<1x8xf32>
    %21 = arith.subf %20, %19 : vector<1x8xf32>
    %22 = arith.mulf %14, %21 : vector<1x8xf32>
    %cst_8 = arith.constant 1.000000e+00 : f32
    %23 = vector.broadcast %cst_8 : f32 to vector<1x8xf32>
    %24 = arith.subf %23, %11 : vector<1x8xf32>
    %cst_9 = arith.constant 1.000000e+00 : f32
    %25 = vector.broadcast %cst_9 : f32 to vector<1x8xf32>
    %26 = arith.subf %25, %11 : vector<1x8xf32>
    %27 = arith.mulf %24, %26 : vector<1x8xf32>
    %cst_10 = arith.constant 2.500000e-01 : f32
    %28 = vector.broadcast %cst_10 : f32 to vector<1x8xf32>
    %29 = arith.mulf %28, %27 : vector<1x8xf32>
    %cst_11 = arith.constant 9.99999993E-9 : f32
    %30 = vector.broadcast %cst_11 : f32 to vector<1x8xf32>
    %31 = arith.addf %11, %30 : vector<1x8xf32>
    %32 = math.log %31 : vector<1x8xf32>
    %cst_12 = arith.constant 0.000000e+00 : f32
    %33 = vector.broadcast %cst_12 : f32 to vector<1x8xf32>
    %34 = arith.subf %33, %32 : vector<1x8xf32>
    %35 = arith.mulf %29, %34 : vector<1x8xf32>
    %36 = arith.subf %35, %22 : vector<1x8xf32>
    %c0_13 = arith.constant 0 : index
    %c0_14 = arith.constant 0 : index
    %c0_15 = arith.constant 0 : index
    %c0_16 = arith.constant 0 : index
    %37 = vector.load %arg4[%c0_13, %c0_14, %c0_15, %c0_16] : memref<1x1x4x8xf32, #tpu.memory_space<vmem>>, vector<1x1x1x8xf32>
    %38 = vector.shape_cast %37 : vector<1x1x1x8xf32> to vector<1x8xf32>
    %c0_17 = arith.constant 0 : index
    %c0_18 = arith.constant 0 : index
    %c1 = arith.constant 1 : index
    %c0_19 = arith.constant 0 : index
    %39 = vector.load %arg4[%c0_17, %c0_18, %c1, %c0_19] : memref<1x1x4x8xf32, #tpu.memory_space<vmem>>, vector<1x1x1x8xf32>
    %40 = vector.shape_cast %39 : vector<1x1x1x8xf32> to vector<1x8xf32>
    %c0_20 = arith.constant 0 : index
    %c0_21 = arith.constant 0 : index
    %c2 = arith.constant 2 : index
    %c0_22 = arith.constant 0 : index
    %41 = vector.load %arg4[%c0_20, %c0_21, %c2, %c0_22] : memref<1x1x4x8xf32, #tpu.memory_space<vmem>>, vector<1x1x1x8xf32>
    %42 = vector.shape_cast %41 : vector<1x1x1x8xf32> to vector<1x8xf32>
    %c0_23 = arith.constant 0 : index
    %c0_24 = arith.constant 0 : index
    %c3 = arith.constant 3 : index
    %c0_25 = arith.constant 0 : index
    %43 = vector.load %arg4[%c0_23, %c0_24, %c3, %c0_25] : memref<1x1x4x8xf32, #tpu.memory_space<vmem>>, vector<1x1x1x8xf32>
    %44 = vector.shape_cast %43 : vector<1x1x1x8xf32> to vector<1x8xf32>
    %c0_26 = arith.constant 0 : index
    %c0_27 = arith.constant 0 : index
    %c0_28 = arith.constant 0 : index
    %45 = vector.load %arg5[%c0_26, %c0_27, %c0_28] : memref<1x2x4xf32, #tpu.memory_space<vmem>>, vector<1x2x1xf32>
    %46 = vector.shape_cast %45 : vector<1x2x1xf32> to vector<2x1xf32>
    %c0_29 = arith.constant 0 : index
    %c0_30 = arith.constant 0 : index
    %c1_31 = arith.constant 1 : index
    %47 = vector.load %arg5[%c0_29, %c0_30, %c1_31] : memref<1x2x4xf32, #tpu.memory_space<vmem>>, vector<1x2x1xf32>
    %48 = vector.shape_cast %47 : vector<1x2x1xf32> to vector<2x1xf32>
    %c0_32 = arith.constant 0 : index
    %c0_33 = arith.constant 0 : index
    %c2_34 = arith.constant 2 : index
    %49 = vector.load %arg5[%c0_32, %c0_33, %c2_34] : memref<1x2x4xf32, #tpu.memory_space<vmem>>, vector<1x2x1xf32>
    %50 = vector.shape_cast %49 : vector<1x2x1xf32> to vector<2x1xf32>
    %c0_35 = arith.constant 0 : index
    %c0_36 = arith.constant 0 : index
    %c3_37 = arith.constant 3 : index
    %51 = vector.load %arg5[%c0_35, %c0_36, %c3_37] : memref<1x2x4xf32, #tpu.memory_space<vmem>>, vector<1x2x1xf32>
    %52 = vector.shape_cast %51 : vector<1x2x1xf32> to vector<2x1xf32>
    %53 = vector.broadcast %46 : vector<2x1xf32> to vector<2x8xf32>
    %54 = vector.broadcast %38 : vector<1x8xf32> to vector<2x8xf32>
    %55 = arith.subf %53, %54 : vector<2x8xf32>
    %56 = math.absf %55 : vector<2x8xf32>
    %57 = vector.broadcast %48 : vector<2x1xf32> to vector<2x8xf32>
    %58 = vector.broadcast %40 : vector<1x8xf32> to vector<2x8xf32>
    %59 = arith.subf %57, %58 : vector<2x8xf32>
    %60 = math.absf %59 : vector<2x8xf32>
    %61 = arith.addf %56, %60 : vector<2x8xf32>
    %62 = vector.broadcast %50 : vector<2x1xf32> to vector<2x8xf32>
    %63 = vector.broadcast %42 : vector<1x8xf32> to vector<2x8xf32>
    %64 = arith.subf %62, %63 : vector<2x8xf32>
    %65 = math.absf %64 : vector<2x8xf32>
    %66 = arith.addf %61, %65 : vector<2x8xf32>
    %67 = vector.broadcast %52 : vector<2x1xf32> to vector<2x8xf32>
    %68 = vector.broadcast %44 : vector<1x8xf32> to vector<2x8xf32>
    %69 = arith.subf %67, %68 : vector<2x8xf32>
    %70 = math.absf %69 : vector<2x8xf32>
    %71 = arith.addf %66, %70 : vector<2x8xf32>
    %cst_38 = arith.constant 5.000000e-01 : f32
    %72 = vector.broadcast %cst_38 : f32 to vector<1x8xf32>
    %73 = arith.mulf %72, %42 : vector<1x8xf32>
    %74 = arith.subf %38, %73 : vector<1x8xf32>
    %cst_39 = arith.constant 5.000000e-01 : f32
    %75 = vector.broadcast %cst_39 : f32 to vector<1x8xf32>
    %76 = arith.mulf %75, %44 : vector<1x8xf32>
    %77 = arith.subf %40, %76 : vector<1x8xf32>
    %cst_40 = arith.constant 5.000000e-01 : f32
    %78 = vector.broadcast %cst_40 : f32 to vector<1x8xf32>
    %79 = arith.mulf %78, %42 : vector<1x8xf32>
    %80 = arith.addf %38, %79 : vector<1x8xf32>
    %cst_41 = arith.constant 5.000000e-01 : f32
    %81 = vector.broadcast %cst_41 : f32 to vector<1x8xf32>
    %82 = arith.mulf %81, %44 : vector<1x8xf32>
    %83 = arith.addf %40, %82 : vector<1x8xf32>
    %cst_42 = arith.constant 5.000000e-01 : f32
    %84 = vector.broadcast %cst_42 : f32 to vector<2x1xf32>
    %85 = arith.mulf %84, %50 : vector<2x1xf32>
    %86 = arith.subf %46, %85 : vector<2x1xf32>
    %cst_43 = arith.constant 5.000000e-01 : f32
    %87 = vector.broadcast %cst_43 : f32 to vector<2x1xf32>
    %88 = arith.mulf %87, %52 : vector<2x1xf32>
    %89 = arith.subf %48, %88 : vector<2x1xf32>
    %cst_44 = arith.constant 5.000000e-01 : f32
    %90 = vector.broadcast %cst_44 : f32 to vector<2x1xf32>
    %91 = arith.mulf %90, %50 : vector<2x1xf32>
    %92 = arith.addf %46, %91 : vector<2x1xf32>
    %cst_45 = arith.constant 5.000000e-01 : f32
    %93 = vector.broadcast %cst_45 : f32 to vector<2x1xf32>
    %94 = arith.mulf %93, %52 : vector<2x1xf32>
    %95 = arith.addf %48, %94 : vector<2x1xf32>
    %96 = arith.subf %80, %74 : vector<1x8xf32>
    %97 = arith.subf %83, %77 : vector<1x8xf32>
    %98 = arith.mulf %96, %97 : vector<1x8xf32>
    %99 = arith.subf %92, %86 : vector<2x1xf32>
    %100 = arith.subf %95, %89 : vector<2x1xf32>
    %101 = arith.mulf %99, %100 : vector<2x1xf32>
    %102 = vector.broadcast %74 : vector<1x8xf32> to vector<2x8xf32>
    %103 = vector.broadcast %86 : vector<2x1xf32> to vector<2x8xf32>
    %104 = arith.maximumf %102, %103 : vector<2x8xf32>
    %105 = vector.broadcast %77 : vector<1x8xf32> to vector<2x8xf32>
    %106 = vector.broadcast %89 : vector<2x1xf32> to vector<2x8xf32>
    %107 = arith.maximumf %105, %106 : vector<2x8xf32>
    %108 = vector.broadcast %80 : vector<1x8xf32> to vector<2x8xf32>
    %109 = vector.broadcast %92 : vector<2x1xf32> to vector<2x8xf32>
    %110 = arith.minimumf %108, %109 : vector<2x8xf32>
    %111 = vector.broadcast %83 : vector<1x8xf32> to vector<2x8xf32>
    %112 = vector.broadcast %95 : vector<2x1xf32> to vector<2x8xf32>
    %113 = arith.minimumf %111, %112 : vector<2x8xf32>
    %114 = arith.subf %110, %104 : vector<2x8xf32>
    %cst_46 = arith.constant 0.000000e+00 : f32
    %115 = vector.broadcast %cst_46 : f32 to vector<2x8xf32>
    %116 = arith.maximumf %114, %115 : vector<2x8xf32>
    %117 = arith.subf %113, %107 : vector<2x8xf32>
    %cst_47 = arith.constant 0.000000e+00 : f32
    %118 = vector.broadcast %cst_47 : f32 to vector<2x8xf32>
    %119 = arith.maximumf %117, %118 : vector<2x8xf32>
    %120 = arith.mulf %116, %119 : vector<2x8xf32>
    %121 = vector.broadcast %98 : vector<1x8xf32> to vector<2x8xf32>
    %122 = vector.broadcast %101 : vector<2x1xf32> to vector<2x8xf32>
    %123 = arith.addf %121, %122 : vector<2x8xf32>
    %124 = arith.subf %123, %120 : vector<2x8xf32>
    %cst_48 = arith.constant 9.99999993E-9 : f32
    %125 = vector.broadcast %cst_48 : f32 to vector<2x8xf32>
    %126 = arith.addf %124, %125 : vector<2x8xf32>
    %127 = tpu.reciprocal %126 {approx = true} : vector<2x8xf32> -> vector<2x8xf32>
    %128 = arith.mulf %120, %127 : vector<2x8xf32>
    %129 = vector.broadcast %74 : vector<1x8xf32> to vector<2x8xf32>
    %130 = vector.broadcast %86 : vector<2x1xf32> to vector<2x8xf32>
    %131 = arith.minimumf %129, %130 : vector<2x8xf32>
    %132 = vector.broadcast %77 : vector<1x8xf32> to vector<2x8xf32>
    %133 = vector.broadcast %89 : vector<2x1xf32> to vector<2x8xf32>
    %134 = arith.minimumf %132, %133 : vector<2x8xf32>
    %135 = vector.broadcast %80 : vector<1x8xf32> to vector<2x8xf32>
    %136 = vector.broadcast %92 : vector<2x1xf32> to vector<2x8xf32>
    %137 = arith.maximumf %135, %136 : vector<2x8xf32>
    %138 = vector.broadcast %83 : vector<1x8xf32> to vector<2x8xf32>
    %139 = vector.broadcast %95 : vector<2x1xf32> to vector<2x8xf32>
    %140 = arith.maximumf %138, %139 : vector<2x8xf32>
    %141 = arith.subf %137, %131 : vector<2x8xf32>
    %142 = arith.subf %140, %134 : vector<2x8xf32>
    %143 = arith.mulf %141, %142 : vector<2x8xf32>
    %144 = arith.subf %143, %124 : vector<2x8xf32>
    %cst_49 = arith.constant 9.99999993E-9 : f32
    %145 = vector.broadcast %cst_49 : f32 to vector<2x8xf32>
    %146 = arith.addf %143, %145 : vector<2x8xf32>
    %147 = tpu.reciprocal %146 {approx = true} : vector<2x8xf32> -> vector<2x8xf32>
    %148 = arith.mulf %144, %147 : vector<2x8xf32>
    %149 = arith.subf %128, %148 : vector<2x8xf32>
    %cst_50 = arith.constant 5.000000e+00 : f32
    %150 = vector.broadcast %cst_50 : f32 to vector<2x8xf32>
    %151 = arith.mulf %150, %71 : vector<2x8xf32>
    %cst_51 = arith.constant 2.000000e+00 : f32
    %152 = vector.broadcast %cst_51 : f32 to vector<1x8xf32>
    %153 = arith.mulf %152, %36 : vector<1x8xf32>
    %154 = vector.broadcast %153 : vector<1x8xf32> to vector<2x8xf32>
    %155 = arith.addf %151, %154 : vector<2x8xf32>
    %cst_52 = arith.constant 2.000000e+00 : f32
    %156 = vector.broadcast %cst_52 : f32 to vector<2x8xf32>
    %157 = arith.mulf %156, %149 : vector<2x8xf32>
    %158 = arith.subf %155, %157 : vector<2x8xf32>
    %159 = tpu.iota {dimensions = array<i32: 1>} : vector<1x8xi32>
    %160 = arith.sitofp %159 : vector<1x8xi32> to vector<1x8xf32>
    %cst_53 = arith.constant 0.000000e+00 : f32
    %161 = vector.broadcast %cst_53 : f32 to vector<1x8xf32>
    %cst_54 = arith.constant 0.000000e+00 : f32
    %162 = vector.broadcast %cst_54 : f32 to vector<1x8xf32>
    %cst_55 = arith.constant 0.000000e+00 : f32
    %163 = vector.broadcast %cst_55 : f32 to vector<1x1xf32>
    %cst_56 = arith.constant 0.000000e+00 : f32
    %164 = vector.broadcast %cst_56 : f32 to vector<1x1xf32>
    %c0_i32_57 = arith.constant 0 : i32
    %165 = arith.cmpi sgt, %4, %c0_i32_57 : i32
    %166 = arith.extui %165 : i1 to i32
    %167 = arith.sitofp %166 : i32 to f32
    %168 = vector.extract_strided_slice %158 {offsets = [0, 0], sizes = [1, 8], strides = [1, 1]} : vector<2x8xf32> to vector<1x8xf32>
    %cst_58 = arith.constant 1.000000e+09 : f32
    %169 = vector.broadcast %cst_58 : f32 to vector<1x8xf32>
    %170 = arith.mulf %161, %169 : vector<1x8xf32>
    %171 = arith.addf %168, %170 : vector<1x8xf32>
    %cst_59 = arith.constant dense<0x7F800000> : vector<1xf32>
    %172 = vector.multi_reduction <minimumf>, %171, %cst_59 [1] : vector<1x8xf32> to vector<1xf32>
    %173 = vector.shape_cast %172 : vector<1xf32> to vector<1x1xf32>
    %174 = vector.broadcast %173 : vector<1x1xf32> to vector<1x8xf32>
    %175 = arith.cmpf ole, %171, %174 : vector<1x8xf32>
    %cst_60 = arith.constant 8.000000e+00 : f32
    %176 = vector.broadcast %cst_60 : f32 to vector<1x8xf32>
    %177 = arith.select %175, %160, %176 : vector<1x8xi1>, vector<1x8xf32>
    %cst_61 = arith.constant dense<0x7F800000> : vector<1xf32>
    %178 = vector.multi_reduction <minimumf>, %177, %cst_61 [1] : vector<1x8xf32> to vector<1xf32>
    %179 = vector.shape_cast %178 : vector<1xf32> to vector<1x1xf32>
    %180 = vector.broadcast %179 : vector<1x1xf32> to vector<1x8xf32>
    %181 = arith.cmpf oeq, %160, %180 : vector<1x8xf32>
    %182 = arith.extui %181 : vector<1x8xi1> to vector<1x8xi32>
    %183 = arith.sitofp %182 : vector<1x8xi32> to vector<1x8xf32>
    %184 = arith.addf %161, %183 : vector<1x8xf32>
    %185 = vector.broadcast %167 : f32 to vector<1x8xf32>
    %186 = arith.mulf %183, %185 : vector<1x8xf32>
    %187 = arith.addf %162, %186 : vector<1x8xf32>
    %188 = vector.extract_strided_slice %71 {offsets = [0, 0], sizes = [1, 8], strides = [1, 1]} : vector<2x8xf32> to vector<1x8xf32>
    %189 = arith.mulf %183, %188 : vector<1x8xf32>
    %cst_62 = arith.constant dense<0.000000e+00> : vector<1xf32>
    %190 = vector.multi_reduction <add>, %189, %cst_62 [1] : vector<1x8xf32> to vector<1xf32>
    %191 = vector.shape_cast %190 : vector<1xf32> to vector<1x1xf32>
    %192 = vector.broadcast %167 : f32 to vector<1x1xf32>
    %193 = arith.mulf %192, %191 : vector<1x1xf32>
    %194 = arith.addf %163, %193 : vector<1x1xf32>
    %195 = vector.extract_strided_slice %149 {offsets = [0, 0], sizes = [1, 8], strides = [1, 1]} : vector<2x8xf32> to vector<1x8xf32>
    %196 = arith.mulf %183, %195 : vector<1x8xf32>
    %cst_63 = arith.constant dense<0.000000e+00> : vector<1xf32>
    %197 = vector.multi_reduction <add>, %196, %cst_63 [1] : vector<1x8xf32> to vector<1xf32>
    %198 = vector.shape_cast %197 : vector<1xf32> to vector<1x1xf32>
    %cst_64 = arith.constant 1.000000e+00 : f32
    %199 = vector.broadcast %cst_64 : f32 to vector<1x1xf32>
    %200 = arith.subf %199, %198 : vector<1x1xf32>
    %201 = vector.broadcast %167 : f32 to vector<1x1xf32>
    %202 = arith.mulf %201, %200 : vector<1x1xf32>
    %203 = arith.addf %164, %202 : vector<1x1xf32>
    %c1_i32 = arith.constant 1 : i32
    %204 = arith.cmpi sgt, %4, %c1_i32 : i32
    %205 = arith.extui %204 : i1 to i32
    %206 = arith.sitofp %205 : i32 to f32
    %207 = vector.extract_strided_slice %158 {offsets = [1, 0], sizes = [1, 8], strides = [1, 1]} : vector<2x8xf32> to vector<1x8xf32>
    %cst_65 = arith.constant 1.000000e+09 : f32
    %208 = vector.broadcast %cst_65 : f32 to vector<1x8xf32>
    %209 = arith.mulf %184, %208 : vector<1x8xf32>
    %210 = arith.addf %207, %209 : vector<1x8xf32>
    %cst_66 = arith.constant dense<0x7F800000> : vector<1xf32>
    %211 = vector.multi_reduction <minimumf>, %210, %cst_66 [1] : vector<1x8xf32> to vector<1xf32>
    %212 = vector.shape_cast %211 : vector<1xf32> to vector<1x1xf32>
    %213 = vector.broadcast %212 : vector<1x1xf32> to vector<1x8xf32>
    %214 = arith.cmpf ole, %210, %213 : vector<1x8xf32>
    %cst_67 = arith.constant 8.000000e+00 : f32
    %215 = vector.broadcast %cst_67 : f32 to vector<1x8xf32>
    %216 = arith.select %214, %160, %215 : vector<1x8xi1>, vector<1x8xf32>
    %cst_68 = arith.constant dense<0x7F800000> : vector<1xf32>
    %217 = vector.multi_reduction <minimumf>, %216, %cst_68 [1] : vector<1x8xf32> to vector<1xf32>
    %218 = vector.shape_cast %217 : vector<1xf32> to vector<1x1xf32>
    %219 = vector.broadcast %218 : vector<1x1xf32> to vector<1x8xf32>
    %220 = arith.cmpf oeq, %160, %219 : vector<1x8xf32>
    %221 = arith.extui %220 : vector<1x8xi1> to vector<1x8xi32>
    %222 = arith.sitofp %221 : vector<1x8xi32> to vector<1x8xf32>
    %223 = vector.broadcast %206 : f32 to vector<1x8xf32>
    %224 = arith.mulf %222, %223 : vector<1x8xf32>
    %225 = arith.addf %187, %224 : vector<1x8xf32>
    %226 = vector.extract_strided_slice %71 {offsets = [1, 0], sizes = [1, 8], strides = [1, 1]} : vector<2x8xf32> to vector<1x8xf32>
    %227 = arith.mulf %222, %226 : vector<1x8xf32>
    %cst_69 = arith.constant dense<0.000000e+00> : vector<1xf32>
    %228 = vector.multi_reduction <add>, %227, %cst_69 [1] : vector<1x8xf32> to vector<1xf32>
    %229 = vector.shape_cast %228 : vector<1xf32> to vector<1x1xf32>
    %230 = vector.broadcast %206 : f32 to vector<1x1xf32>
    %231 = arith.mulf %230, %229 : vector<1x1xf32>
    %232 = arith.addf %194, %231 : vector<1x1xf32>
    %233 = vector.extract_strided_slice %149 {offsets = [1, 0], sizes = [1, 8], strides = [1, 1]} : vector<2x8xf32> to vector<1x8xf32>
    %234 = arith.mulf %222, %233 : vector<1x8xf32>
    %cst_70 = arith.constant dense<0.000000e+00> : vector<1xf32>
    %235 = vector.multi_reduction <add>, %234, %cst_70 [1] : vector<1x8xf32> to vector<1xf32>
    %236 = vector.shape_cast %235 : vector<1xf32> to vector<1x1xf32>
    %cst_71 = arith.constant 1.000000e+00 : f32
    %237 = vector.broadcast %cst_71 : f32 to vector<1x1xf32>
    %238 = arith.subf %237, %236 : vector<1x1xf32>
    %239 = vector.broadcast %206 : f32 to vector<1x1xf32>
    %240 = arith.mulf %239, %238 : vector<1x1xf32>
    %241 = arith.addf %203, %240 : vector<1x1xf32>
    %cst_72 = arith.constant 0.000000e+00 : f32
    %242 = vector.broadcast %cst_72 : f32 to vector<1x8xf32>
    %243 = arith.maximumf %6, %242 : vector<1x8xf32>
    %244 = arith.mulf %6, %225 : vector<1x8xf32>
    %245 = arith.subf %243, %244 : vector<1x8xf32>
    %246 = math.absf %6 : vector<1x8xf32>
    %cst_73 = arith.constant 0.000000e+00 : f32
    %247 = vector.broadcast %cst_73 : f32 to vector<1x8xf32>
    %248 = arith.subf %247, %246 : vector<1x8xf32>
    %249 = math.exp %248 : vector<1x8xf32>
    %cst_74 = arith.constant 1.000000e+00 : f32
    %250 = vector.broadcast %cst_74 : f32 to vector<1x8xf32>
    %251 = arith.addf %250, %249 : vector<1x8xf32>
    %252 = math.log %251 : vector<1x8xf32>
    %253 = arith.addf %245, %252 : vector<1x8xf32>
    %254 = arith.mulf %11, %225 : vector<1x8xf32>
    %cst_75 = arith.constant 1.000000e+00 : f32
    %255 = vector.broadcast %cst_75 : f32 to vector<1x8xf32>
    %256 = arith.subf %255, %11 : vector<1x8xf32>
    %cst_76 = arith.constant 1.000000e+00 : f32
    %257 = vector.broadcast %cst_76 : f32 to vector<1x8xf32>
    %258 = arith.subf %257, %225 : vector<1x8xf32>
    %259 = arith.mulf %256, %258 : vector<1x8xf32>
    %260 = arith.addf %254, %259 : vector<1x8xf32>
    %cst_77 = arith.constant 2.500000e-01 : f32
    %261 = vector.broadcast %cst_77 : f32 to vector<1x8xf32>
    %262 = arith.mulf %261, %225 : vector<1x8xf32>
    %cst_78 = arith.constant 1.000000e+00 : f32
    %263 = vector.broadcast %cst_78 : f32 to vector<1x8xf32>
    %264 = arith.subf %263, %225 : vector<1x8xf32>
    %cst_79 = arith.constant 7.500000e-01 : f32
    %265 = vector.broadcast %cst_79 : f32 to vector<1x8xf32>
    %266 = arith.mulf %265, %264 : vector<1x8xf32>
    %267 = arith.addf %262, %266 : vector<1x8xf32>
    %268 = arith.mulf %267, %253 : vector<1x8xf32>
    %cst_80 = arith.constant 1.000000e+00 : f32
    %269 = vector.broadcast %cst_80 : f32 to vector<1x8xf32>
    %270 = arith.subf %269, %260 : vector<1x8xf32>
    %cst_81 = arith.constant 1.000000e+00 : f32
    %271 = vector.broadcast %cst_81 : f32 to vector<1x8xf32>
    %272 = arith.subf %271, %260 : vector<1x8xf32>
    %273 = arith.mulf %270, %272 : vector<1x8xf32>
    %274 = arith.mulf %268, %273 : vector<1x8xf32>
    %c0_82 = arith.constant 0 : index
    %c0_83 = arith.constant 0 : index
    %c0_84 = arith.constant 0 : index
    %275 = vector.load %arg6[%c0_82, %c0_83, %c0_84] : memref<1x1x1xf32, #tpu.memory_space<vmem>>, vector<1x1x1xf32>
    %276 = vector.shape_cast %275 : vector<1x1x1xf32> to vector<1x1xf32>
    %cst_85 = arith.constant dense<0.000000e+00> : vector<1xf32>
    %277 = vector.multi_reduction <add>, %274, %cst_85 [1] : vector<1x8xf32> to vector<1xf32>
    %278 = vector.shape_cast %277 : vector<1xf32> to vector<1x1xf32>
    %279 = arith.addf %276, %278 : vector<1x1xf32>
    %c0_86 = arith.constant 0 : index
    %c0_87 = arith.constant 0 : index
    %c0_88 = arith.constant 0 : index
    %280 = vector.load %arg6[%c0_86, %c0_87, %c0_88] : memref<1x1x1xf32, #tpu.memory_space<vmem>>, vector<1x1x1xf32>
    %281 = vector.shape_cast %280 : vector<1x1x1xf32> to vector<1x1xf32>
    %282 = vector.shape_cast %279 : vector<1x1xf32> to vector<1x1x1xf32>
    tpu.vector_store %arg6[%c0_86, %c0_87, %c0_88], %282 {strides = array<i32>} : memref<1x1x1xf32, #tpu.memory_space<vmem>>, vector<1x1x1xf32>,
    %c0_89 = arith.constant 0 : index
    %c0_90 = arith.constant 0 : index
    %c0_91 = arith.constant 0 : index
    %283 = vector.load %arg7[%c0_89, %c0_90, %c0_91] : memref<1x1x1xf32, #tpu.memory_space<vmem>>, vector<1x1x1xf32>
    %284 = vector.shape_cast %283 : vector<1x1x1xf32> to vector<1x1xf32>
    %285 = arith.addf %284, %232 : vector<1x1xf32>
    %c0_92 = arith.constant 0 : index
    %c0_93 = arith.constant 0 : index
    %c0_94 = arith.constant 0 : index
    %286 = vector.load %arg7[%c0_92, %c0_93, %c0_94] : memref<1x1x1xf32, #tpu.memory_space<vmem>>, vector<1x1x1xf32>
    %287 = vector.shape_cast %286 : vector<1x1x1xf32> to vector<1x1xf32>
    %288 = vector.shape_cast %285 : vector<1x1xf32> to vector<1x1x1xf32>
    tpu.vector_store %arg7[%c0_92, %c0_93, %c0_94], %288 {strides = array<i32>} : memref<1x1x1xf32, #tpu.memory_space<vmem>>, vector<1x1x1xf32>,
    %c0_95 = arith.constant 0 : index
    %c0_96 = arith.constant 0 : index
    %c0_97 = arith.constant 0 : index
    %289 = vector.load %arg8[%c0_95, %c0_96, %c0_97] : memref<1x1x1xf32, #tpu.memory_space<vmem>>, vector<1x1x1xf32>
    %290 = vector.shape_cast %289 : vector<1x1x1xf32> to vector<1x1xf32>
    %291 = arith.addf %290, %241 : vector<1x1xf32>
    %c0_98 = arith.constant 0 : index
    %c0_99 = arith.constant 0 : index
    %c0_100 = arith.constant 0 : index
    %292 = vector.load %arg8[%c0_98, %c0_99, %c0_100] : memref<1x1x1xf32, #tpu.memory_space<vmem>>, vector<1x1x1xf32>
    %293 = vector.shape_cast %292 : vector<1x1x1xf32> to vector<1x1xf32>
    %294 = vector.shape_cast %291 : vector<1x1xf32> to vector<1x1x1xf32>
    tpu.vector_store %arg8[%c0_98, %c0_99, %c0_100], %294 {strides = array<i32>} : memref<1x1x1xf32, #tpu.memory_space<vmem>>, vector<1x1x1xf32>,
    return
  }
  func.func @transform_0(%arg0: i32, %arg1: i32, %arg2: memref<4xi32, #tpu.memory_space<smem>>) -> (i32, i32, i32, i32) {
    %c0_i32 = arith.constant 0 : i32
    %c0_i32_0 = arith.constant 0 : i32
    %c0_i32_1 = arith.constant 0 : i32
    return %arg0, %arg1, %c0_i32, %c0_i32_0 : i32, i32, i32, i32
  }
  func.func @transform_1(%arg0: i32, %arg1: i32, %arg2: memref<4xi32, #tpu.memory_space<smem>>) -> (i32, i32, i32, i32) {
    %c0_i32 = arith.constant 0 : i32
    %c0_i32_0 = arith.constant 0 : i32
    %c0_i32_1 = arith.constant 0 : i32
    return %arg0, %arg1, %c0_i32, %c0_i32_0 : i32, i32, i32, i32
  }
  func.func @transform_2(%arg0: i32, %arg1: i32, %arg2: memref<4xi32, #tpu.memory_space<smem>>) -> (i32, i32, i32) {
    %c0_i32 = arith.constant 0 : i32
    %c0_i32_0 = arith.constant 0 : i32
    %c0_i32_1 = arith.constant 0 : i32
    return %arg1, %c0_i32, %c0_i32_0 : i32, i32, i32
  }
  func.func @transform_3(%arg0: i32, %arg1: i32, %arg2: memref<4xi32, #tpu.memory_space<smem>>) -> (i32, i32, i32) {
    %c0_i32 = arith.constant 0 : i32
    %c0_i32_0 = arith.constant 0 : i32
    %c0_i32_1 = arith.constant 0 : i32
    return %arg0, %c0_i32, %c0_i32_0 : i32, i32, i32
  }
  func.func @transform_4(%arg0: i32, %arg1: i32, %arg2: memref<4xi32, #tpu.memory_space<smem>>) -> (i32, i32, i32) {
    %c0_i32 = arith.constant 0 : i32
    %c0_i32_0 = arith.constant 0 : i32
    %c0_i32_1 = arith.constant 0 : i32
    return %arg0, %c0_i32, %c0_i32_0 : i32, i32, i32
  }
  func.func @transform_5(%arg0: i32, %arg1: i32, %arg2: memref<4xi32, #tpu.memory_space<smem>>) -> (i32, i32, i32) {
    %c0_i32 = arith.constant 0 : i32
    %c0_i32_0 = arith.constant 0 : i32
    %c0_i32_1 = arith.constant 0 : i32
    return %arg0, %c0_i32, %c0_i32_0 : i32, i32, i32
  }
}

</mosaic_0001>

<llo_original>
// kernel: _classwise_losses.1
$region0: #{_classwise_losses.1}
  #allocation0 [shape = 'u32[]', space=smem, size = 0x4, offset = 0x4, fixed_abs, tag = 'smem constant byte address 0x4 - core index']
  #allocation1 [shape = 'u32[144,128]{1,0:T(1,128)}', space=vmem, size = 0x12000, scoped, tag = 'internal scratch']
  #allocation2 [shape = 's32[1]{0}', space=sflag, size = 0x4, scoped, tag = 'scoped memory for _classwise_losses.1']
  #allocation3 [shape = 'u8[512]{0}', space=smem, size = 0x200, scoped, tag = 'prefetched SMEM operand 0']
  %s0 = inlined_call_operand.vmem [shape: s32[4], index: 0, kind: input, shape index: {}]
  %s1 = inlined_call_operand.hbm [shape: f32[3,4,1,8], index: 1, kind: input, shape index: {}]
  %s2 = inlined_call_operand.hbm [shape: f32[3,4,4,8], index: 2, kind: input, shape index: {}]
  %s3 = inlined_call_operand.vmem [shape: f32[4,2,4], index: 3, kind: input, shape index: {}]
  %s4 = inlined_call_operand.vmem [shape: f32[3,1,1], index: 4, kind: output, shape index: {0}]
  %s5 = inlined_call_operand.vmem [shape: f32[3,1,1], index: 5, kind: output, shape index: {1}]
  %s6 = inlined_call_operand.vmem [shape: f32[3,1,1], index: 6, kind: output, shape index: {2}]
  %7 = xla_tuple %s4, %s5, %s6
  %s8 = sld [smem:[#allocation0]]
  $region73: #{_classwise_losses.1} parent=0
    _
  %s10 = ssub.s32 1, %s8
  %s11 = scalar_select 0, %s10, %s8
  %s12 = sshll.u32 %s0, 4
  %s13 = int_to_ptr.vmem [resolvable:$true] %s12
  %15 = dma.vmem_to_smem %s13, 16, [#allocation3], [#allocation2]
  %16 = dma.done [#allocation2], 16
  %17 = sfence
  $region1: #{_classwise_losses.1} parent=0
    #allocation4 [shape = 'u8[1024]{0}', space=vmem, size = 0x400, scoped, tag = 'input window, operand 1']
    #allocation5 [shape = 's32[2]{0}', space=sflag, size = 0x8, scoped, tag = 'scoped memory for _classwise_losses.1']
    #allocation6 [shape = 'u8[4096]{0}', space=vmem, size = 0x1000, scoped, tag = 'input window, operand 2']
    #allocation7 [shape = 's32[2]{0}', space=sflag, size = 0x8, scoped, tag = 'scoped memory for _classwise_losses.1']
    %18 = vsyncpa [#allocation5], 0
    %s19 = scalar_lea.sflag [#allocation5], 1
    %20 = vsyncpa %s19, 0
    %21 = vsyncpa [#allocation7], 0
    %s22 = scalar_lea.sflag [#allocation7], 1
    %23 = vsyncpa %s22, 0
    loop: start=0, step=1, limit=14
    $region2: #{_classwise_losses.1} parent=1 // loop_pre_header
      _
    $region3: #{_classwise_losses.1} parent=1 // loop_header
      %s25 = sphi 0, %s29
      %p26 = scmp.ge.s32.totalorder %s25, 14
      %s32 = sphi 0, %s44
      %s33 = sphi 0, %s40
      %s34 = sphi 0, %s32
      %s35 = sphi 0, %s33
      %s36 = sphi 0, %s34
      %s37 = sphi 0, %s35
      %s49 = sphi 0, %s51
      %s52 = sphi 0, %s49
      %s53 = sphi 0, %s52
      %s69 = sphi 0, %s53
      %s77 = sphi 0, %s79
      %s80 = sphi 0, %s77
      %s81 = sphi 0, %s80
      %s97 = sphi 0, %s81
      %s103 = sphi 0, %s105
      %s106 = sphi 0, %s103
      %s107 = sphi 0, %s106
      %s123 = sphi 0, %s107
      %s129 = sphi 0, %s131
      %s132 = sphi 0, %s129
      %s133 = sphi 0, %s132
      %s149 = sphi 0, %s133
      %s155 = sphi 0, %s157
      %s158 = sphi 0, %s155
      %s159 = sphi 0, %s158
      %s175 = sphi 0, %s159
      %s181 = sphi 0, %s183
      %s184 = sphi 0, %s181
      %s185 = sphi 0, %s184
      %s201 = sphi 0, %s185
    $region4: #{_classwise_losses.1} parent=1 // loop_header_branch
      %28 = sbr.rel (%p26) target = $region8
    $region5: #{_classwise_losses.1} parent=1 // loop_body
      %s30 = ssub.s32 %s25, 1
      %s31 = ssub.s32 %s25, 2
      %s38 = sadd.s32 1, %s33
      %p39 = scmp.ge.s32.totalorder %s38, 4
      %s40 = scalar_select %p39, 0, %s38
      %s41 = sadd.s32 1, %s32
      %s42 = scalar_select %p39, %s41, %s32
      %p43 = scmp.ge.s32.totalorder %s42, 3
      %s44 = scalar_select %p43, 0, %s42
      %s45 = ssub.s32 %s32, %s44
      %s46 = ssub.s32 %s33, %s40
      %s47 = sor.u32 %s45, %s46
      %p48 = scmp.eq.s32.totalorder %s47, 0
      %s50 = sadd.s32 %s49, 1
      %s51 = scalar_select %p48, %s49, %s50
      %p54 = pneg %p48
      %p55 = scmp.eq.s32.totalorder %s25, 11
      %p56 = por %p54, %p55
      %p57 = scmp.ne.s32.totalorder %s49, %s52
      %p58 = scmp.eq.s32.totalorder %s25, 0
      %p59 = por %p57, %p58
      %p60 = scmp.ne.s32.totalorder %s49, %s52
      %p61 = scmp.eq.s32.totalorder %s30, 11
      %p62 = por %p60, %p61
      %p63 = scmp.ne.s32.totalorder %s52, %s53
      %p64 = scmp.eq.s32.totalorder %s30, 0
      %p65 = por %p63, %p64
      %p66 = scmp.ne.s32.totalorder %s52, %s53
      %p67 = scmp.eq.s32.totalorder %s31, 11
      %p68 = por %p66, %p67
      %p70 = scmp.ne.s32.totalorder %s53, %s69
      %p71 = scmp.eq.s32.totalorder %s31, 0
      %p72 = por %p70, %p71
      %s73 = ssub.s32 %s32, %s44
      %s74 = ssub.s32 %s33, %s40
      %s75 = sor.u32 %s73, %s74
      %p76 = scmp.eq.s32.totalorder %s75, 0
      %s78 = sadd.s32 %s77, 1
      %s79 = scalar_select %p76, %s77, %s78
      %p82 = pneg %p76
      %p83 = scmp.eq.s32.totalorder %s25, 11
      %p84 = por %p82, %p83
      %p85 = scmp.ne.s32.totalorder %s77, %s80
      %p86 = scmp.eq.s32.totalorder %s25, 0
      %p87 = por %p85, %p86
      %p88 = scmp.ne.s32.totalorder %s77, %s80
      %p89 = scmp.eq.s32.totalorder %s30, 11
      %p90 = por %p88, %p89
      %p91 = scmp.ne.s32.totalorder %s80, %s81
      %p92 = scmp.eq.s32.totalorder %s30, 0
      %p93 = por %p91, %p92
      %p94 = scmp.ne.s32.totalorder %s80, %s81
      %p95 = scmp.eq.s32.totalorder %s31, 11
      %p96 = por %p94, %p95
      %p98 = scmp.ne.s32.totalorder %s81, %s97
      %p99 = scmp.eq.s32.totalorder %s31, 0
      %p100 = por %p98, %p99
      %s101 = ssub.s32 %s33, %s40
      %p102 = scmp.eq.s32.totalorder %s101, 0
      %s104 = sadd.s32 %s103, 1
      %s105 = scalar_select %p102, %s103, %s104
      %p108 = pneg %p102
      %p109 = scmp.eq.s32.totalorder %s25, 11
      %p110 = por %p108, %p109
      %p111 = scmp.ne.s32.totalorder %s103, %s106
      %p112 = scmp.eq.s32.totalorder %s25, 0
      %p113 = por %p111, %p112
      %p114 = scmp.ne.s32.totalorder %s103, %s106
      %p115 = scmp.eq.s32.totalorder %s30, 11
      %p116 = por %p114, %p115
      %p117 = scmp.ne.s32.totalorder %s106, %s107
      %p118 = scmp.eq.s32.totalorder %s30, 0
      %p119 = por %p117, %p118
      %p120 = scmp.ne.s32.totalorder %s106, %s107
      %p121 = scmp.eq.s32.totalorder %s31, 11
      %p122 = por %p120, %p121
      %p124 = scmp.ne.s32.totalorder %s107, %s123
      %p125 = scmp.eq.s32.totalorder %s31, 0
      %p126 = por %p124, %p125
      %s127 = ssub.s32 %s32, %s44
      %p128 = scmp.eq.s32.totalorder %s127, 0
      %s130 = sadd.s32 %s129, 1
      %s131 = scalar_select %p128, %s129, %s130
      %p134 = pneg %p128
      %p135 = scmp.eq.s32.totalorder %s25, 11
      %p136 = por %p134, %p135
      %p137 = scmp.ne.s32.totalorder %s129, %s132
      %p138 = scmp.eq.s32.totalorder %s25, 0
      %p139 = por %p137, %p138
      %p140 = scmp.ne.s32.totalorder %s129, %s132
      %p141 = scmp.eq.s32.totalorder %s30, 11
      %p142 = por %p140, %p141
      %p143 = scmp.ne.s32.totalorder %s132, %s133
      %p144 = scmp.eq.s32.totalorder %s30, 0
      %p145 = por %p143, %p144
      %p146 = scmp.ne.s32.totalorder %s132, %s133
      %p147 = scmp.eq.s32.totalorder %s31, 11
      %p148 = por %p146, %p147
      %p150 = scmp.ne.s32.totalorder %s133, %s149
      %p151 = scmp.eq.s32.totalorder %s31, 0
      %p152 = por %p150, %p151
      %s153 = ssub.s32 %s32, %s44
      %p154 = scmp.eq.s32.totalorder %s153, 0
      %s156 = sadd.s32 %s155, 1
      %s157 = scalar_select %p154, %s155, %s156
      %p160 = pneg %p154
      %p161 = scmp.eq.s32.totalorder %s25, 11
      %p162 = por %p160, %p161
      %p163 = scmp.ne.s32.totalorder %s155, %s158
      %p164 = scmp.eq.s32.totalorder %s25, 0
      %p165 = por %p163, %p164
      %p166 = scmp.ne.s32.totalorder %s155, %s158
      %p167 = scmp.eq.s32.totalorder %s30, 11
      %p168 = por %p166, %p167
      %p169 = scmp.ne.s32.totalorder %s158, %s159
      %p170 = scmp.eq.s32.totalorder %s30, 0
      %p171 = por %p169, %p170
      %p172 = scmp.ne.s32.totalorder %s158, %s159
      %p173 = scmp.eq.s32.totalorder %s31, 11
      %p174 = por %p172, %p173
      %p176 = scmp.ne.s32.totalorder %s159, %s175
      %p177 = scmp.eq.s32.totalorder %s31, 0
      %p178 = por %p176, %p177
      %s179 = ssub.s32 %s32, %s44
      %p180 = scmp.eq.s32.totalorder %s179, 0
      %s182 = sadd.s32 %s181, 1
      %s183 = scalar_select %p180, %s181, %s182
      %p186 = pneg %p180
      %p187 = scmp.eq.s32.totalorder %s25, 11
      %p188 = por %p186, %p187
      %p189 = scmp.ne.s32.totalorder %s181, %s184
      %p190 = scmp.eq.s32.totalorder %s25, 0
      %p191 = por %p189, %p190
      %p192 = scmp.ne.s32.totalorder %s181, %s184
      %p193 = scmp.eq.s32.totalorder %s30, 11
      %p194 = por %p192, %p193
      %p195 = scmp.ne.s32.totalorder %s184, %s185
      %p196 = scmp.eq.s32.totalorder %s30, 0
      %p197 = por %p195, %p196
      %p198 = scmp.ne.s32.totalorder %s184, %s185
      %p199 = scmp.eq.s32.totalorder %s31, 11
      %p200 = por %p198, %p199
      %p202 = scmp.ne.s32.totalorder %s185, %s201
      %p203 = scmp.eq.s32.totalorder %s31, 0
      %p204 = por %p202, %p203
      %p205 = scmp.le.s32.totalorder 1, %s25
      %p206 = scmp.lt.s32.totalorder %s25, 13
      %p207 = pnand %p205, %p206
      %p208 = pneg %p207
      // Predicated region
      $region9: #{_classwise_losses.1} parent=5 // pred_check
        _
      $region10: #{_classwise_losses.1} parent=5 // pred_check_branch
        %210 = sbr.rel (%p207) target = $region12
      $region11: #{_classwise_losses.1} parent=5 // pred_region
        %s211 = ssub.s32 %s25, 1
      $region12: #{_classwise_losses.1} parent=5 // pred_fallthru
        _
      %p212 = scmp.lt.s32.totalorder %s25, 12
      // Predicated region
      $region13: #{_classwise_losses.1} parent=5 // pred_check
        %p213 = pneg %p212
      $region14: #{_classwise_losses.1} parent=5 // pred_check_branch
        %215 = sbr.rel (%p213) target = $region16
      $region15: #{_classwise_losses.1} parent=5 // pred_region
        // Predicated region
        $region17: #{_classwise_losses.1} parent=15 // pred_check
          %p216 = pneg %p59
        $region18: #{_classwise_losses.1} parent=15 // pred_check_branch
          %218 = sbr.rel (%p216) target = $region20
        $region19: #{_classwise_losses.1} parent=15 // pred_region
          %s219 = sand.u32 %s49, 1
          %s220 = scalar_lea.sflag [#allocation5], %s219
          %s221 = sand.u32 %s49, 1
          %s222 = scalar_lea.vmem [#allocation4], %s221
          %s224 = ssub.s32 16, 16
          %225 = vsyncadd %s220, %s224
          %s226 = smul.addr %s32, 4
          %s227 = sadd.s32 %s33, %s226
          %s228 = smul.addr %s227, 16
          %s229 = scalar_lea.hbm %s1, %s228
          %s231 = sshll.u32 %s222, 4
          %s232 = int_to_ptr.vmem [resolvable:$true] %s231
          %234 = dma.hbm_to_vmem [thread:$0]  %s229, 16, %s232, %s220
        $region20: #{_classwise_losses.1} parent=15 // pred_fallthru
          _
        // Predicated region
        $region21: #{_classwise_losses.1} parent=15 // pred_check
          %p235 = pneg %p87
        $region22: #{_classwise_losses.1} parent=15 // pred_check_branch
          %237 = sbr.rel (%p235) target = $region24
        $region23: #{_classwise_losses.1} parent=15 // pred_region
          %s238 = sand.u32 %s77, 1
          %s239 = scalar_lea.sflag [#allocation7], %s238
          %s240 = sand.u32 %s77, 1
          %s241 = smul.addr %s240, 4
          %s242 = scalar_lea.vmem [#allocation6], %s241
          %s244 = ssub.s32 64, 64
          %245 = vsyncadd %s239, %s244
          %s246 = smul.addr %s32, 4
          %s247 = sadd.s32 %s33, %s246
          %s248 = smul.addr %s247, 64
          %s249 = scalar_lea.hbm %s2, %s248
          %s251 = sshll.u32 %s242, 4
          %s252 = int_to_ptr.vmem [resolvable:$true] %s251
          %254 = dma.hbm_to_vmem [thread:$0]  %s249, 64, %s252, %s239
        $region24: #{_classwise_losses.1} parent=15 // pred_fallthru
          _
        // Predicated region
        $region25: #{_classwise_losses.1} parent=15 // pred_check
          %p255 = pneg %p113
        $region26: #{_classwise_losses.1} parent=15 // pred_check_branch
          %257 = sbr.rel (%p255) target = $region28
        $region27: #{_classwise_losses.1} parent=15 // pred_region
          %p258 = scmp.lt.s32.totalorder %s33, 3
          %s259 = scalar_select %p258, %s33, 3
          %s260 = smul.addr %s259, 2
          %s261 = scalar_lea.vmem %s3, %s260
        $region28: #{_classwise_losses.1} parent=15 // pred_fallthru
          _
      $region16: #{_classwise_losses.1} parent=5 // pred_fallthru
        _
      %p262 = scmp.le.s32.totalorder 1, %s25
      %p263 = scmp.lt.s32.totalorder %s25, 13
      %p264 = pnand %p262, %p263
      %p265 = pneg %p264
      // Predicated region
      $region29: #{_classwise_losses.1} parent=5 // pred_check
        _
      $region30: #{_classwise_losses.1} parent=5 // pred_check_branch
        %267 = sbr.rel (%p264) target = $region32
      $region31: #{_classwise_losses.1} parent=5 // pred_region
        %s268 = ssub.s32 %s25, 1
        %s269 = sand.u32 %s52, 1
        %s270 = scalar_lea.sflag [#allocation5], %s269
        %s271 = sand.u32 %s52, 1
        %s272 = scalar_lea.vmem [#allocation4], %s271
        // Predicated region
        $region33: #{_classwise_losses.1} parent=31 // pred_check
          %p273 = pneg %p65
        $region34: #{_classwise_losses.1} parent=31 // pred_check_branch
          %275 = sbr.rel (%p273) target = $region36
        $region35: #{_classwise_losses.1} parent=31 // pred_region
          %276 = dma.done %s270, 16
        $region36: #{_classwise_losses.1} parent=31 // pred_fallthru
          _
        %s277 = sand.u32 %s80, 1
        %s278 = scalar_lea.sflag [#allocation7], %s277
        %s279 = sand.u32 %s80, 1
        %s280 = smul.addr %s279, 4
        %s281 = scalar_lea.vmem [#allocation6], %s280
        // Predicated region
        $region37: #{_classwise_losses.1} parent=31 // pred_check
          %p282 = pneg %p93
        $region38: #{_classwise_losses.1} parent=31 // pred_check_branch
          %284 = sbr.rel (%p282) target = $region40
        $region39: #{_classwise_losses.1} parent=31 // pred_region
          %285 = dma.done %s278, 64
        $region40: #{_classwise_losses.1} parent=31 // pred_fallthru
          _
        %s286 = sand.u32 %s52, 1
        %s287 = scalar_lea.sflag [#allocation5], %s286
        %s288 = sand.u32 %s52, 1
        %s289 = scalar_lea.vmem [#allocation4], %s288
        %p290 = pneg %p65
        %p291 = pneg %p62
        %s292 = sand.u32 %s80, 1
        %s293 = scalar_lea.sflag [#allocation7], %s292
        %s294 = sand.u32 %s80, 1
        %s295 = smul.addr %s294, 4
        %s296 = scalar_lea.vmem [#allocation6], %s295
        %p297 = pneg %p93
        %p298 = pneg %p90
        %p299 = scmp.lt.s32.totalorder %s35, 3
        %s300 = scalar_select %p299, %s35, 3
        %s301 = smul.addr %s300, 2
        %s302 = scalar_lea.vmem %s3, %s301
        %p303 = pneg %p119
        %p304 = pneg %p116
        %p305 = pneg %p145
        %p306 = pneg %p142
        %p307 = scmp.lt.s32.totalorder %s34, 2
        %s308 = scalar_select %p307, %s34, 2
        %s309 = scalar_lea.vmem %s4, %s308
        %p310 = pneg %p171
        %p311 = pneg %p168
        %p312 = scmp.lt.s32.totalorder %s34, 2
        %s313 = scalar_select %p312, %s34, 2
        %s314 = scalar_lea.vmem %s5, %s313
        %p315 = pneg %p197
        %p316 = pneg %p194
        %p317 = scmp.lt.s32.totalorder %s34, 2
        %s318 = scalar_select %p317, %s34, 2
        %s319 = scalar_lea.vmem %s6, %s318
        %p320 = scmp.lt.s32.totalorder %s35, 3
        %s321 = scalar_select %p320, %s35, 3
        %s322 = smul.addr %s321, 2
        %s323 = scalar_lea.vmem %s3, %s322
        %p324 = scmp.lt.s32.totalorder %s34, 2
        %s325 = scalar_select %p324, %s34, 2
        %s326 = scalar_lea.vmem %s4, %s325
        %p327 = scmp.lt.s32.totalorder %s34, 2
        %s328 = scalar_select %p327, %s34, 2
        %s329 = scalar_lea.vmem %s5, %s328
        %p330 = scmp.lt.s32.totalorder %s34, 2
        %s331 = scalar_select %p330, %s34, 2
        %s332 = scalar_lea.vmem %s6, %s331
        %p333 = scmp.eq.s32.totalorder %s35, 0
        // Predicated region
        $region41: #{_classwise_losses.1} parent=31 // pred_check
          %p334 = pneg %p333
        $region42: #{_classwise_losses.1} parent=31 // pred_check_branch
          %336 = sbr.rel (%p334) target = $region44
        $region43: #{_classwise_losses.1} parent=31 // pred_region
          %vm337 = vcmask 0
          %338 = vst.msk [vmem:[%s326] sm:$0x1] %vm337, 0.0
          %339 = vst.msk [vmem:[%s329] sm:$0x1] %vm337, 0.0
          %340 = vst.msk [vmem:[%s332] sm:$0x1] %vm337, 0.0
        $region44: #{_classwise_losses.1} parent=31 // pred_fallthru
          _
        %s341 = sld [smem:[#allocation3 + %s35]]
        %v342 = vld [vmem:[%s272] sm:$0x1]
        %v343 = vxor.u32 %v342, 2147483648
        %v344 = vmul.f32 %v343, 1.442695
        %v345 = vpow.pop %v344
        %v346 = vadd.f32 %v345, 1.0
        %v347 = vrcp.pop %v346
        %v348 = vmul.f32 1.0, %v347
        %v349 = vmul.f32 %v348, %v348
        %v350 = vmul.f32 %v349, 0.75
        %v351 = vsub.f32 1.0, %v348
        %v352 = vadd.f32 %v351, 1e-08
        %v353 = vlog2.pop %v352
        %v354 = vmul.f32 %v353, 0.6931472
        %v355 = vsub.f32 0.0, %v354
        %v356 = vmul.f32 %v350, %v355
        %v357 = vmul.f32 %v351, %v351
        %v358 = vmul.f32 %v357, 0.25
        %v359 = vadd.f32 %v348, 1e-08
        %v360 = vlog2.pop %v359
        %v361 = vmul.f32 %v360, 0.6931472
        %v362 = vsub.f32 0.0, %v361
        %v363 = vmul.f32 %v358, %v362
        %v364 = vsub.f32 %v363, %v356
        %v365 = vld [vmem:[%s281] sm:$0x1]
        %v366 = vld [vmem:[%s281 + $0x1] sm:$0x1]
        %v367 = vld [vmem:[%s281 + $0x2] sm:$0x1]
        %v368 = vld [vmem:[%s281 + $0x3] sm:$0x1]
        %v369 = vld [vmem:[%s323] sm:$0x3]
        %371 = vset.pattern.permute.xlu0 0
        %372 = vperm.xlu0 %371, %v369
        %v373 = vpop.permute.xlu0 %372
        %v375 = vlaneseq
        %v376 = vshrl.u32 %v375, 7
        %v377 = vsub.s32 0, %v376
        %v378 = vrot.slane %v365, %v377
        %v379 = vsub.f32 %v373, %v378
        %v380 = vand.u32 2147483647, %v379
        %381 = vset.pattern.permute.xlu0 1
        %382 = vperm.xlu0 %381, %v369
        %v383 = vpop.permute.xlu0 %382
        %v385 = vlaneseq
        %v386 = vshrl.u32 %v385, 7
        %v387 = vsub.s32 0, %v386
        %v388 = vrot.slane %v366, %v387
        %v389 = vsub.f32 %v383, %v388
        %v390 = vand.u32 2147483647, %v389
        %v391 = vadd.f32 %v380, %v390
        %392 = vset.pattern.permute.xlu0 2
        %393 = vperm.xlu0 %392, %v369
        %v394 = vpop.permute.xlu0 %393
        %v396 = vlaneseq
        %v397 = vshrl.u32 %v396, 7
        %v398 = vsub.s32 0, %v397
        %v399 = vrot.slane %v367, %v398
        %v400 = vsub.f32 %v394, %v399
        %v401 = vand.u32 2147483647, %v400
        %v402 = vadd.f32 %v391, %v401
        %403 = vset.pattern.permute.xlu0 3
        %404 = vperm.xlu0 %403, %v369
        %v405 = vpop.permute.xlu0 %404
        %v407 = vlaneseq
        %v408 = vshrl.u32 %v407, 7
        %v409 = vsub.s32 0, %v408
        %v410 = vrot.slane %v368, %v409
        %v411 = vsub.f32 %v405, %v410
        %v412 = vand.u32 2147483647, %v411
        %v413 = vadd.f32 %v402, %v412
        %v414 = vmul.f32 %v367, 0.5
        %v415 = vsub.f32 %v365, %v414
        %v416 = vmul.f32 %v368, 0.5
        %v417 = vsub.f32 %v366, %v416
        %v418 = vadd.f32 %v365, %v414
        %v419 = vadd.f32 %v366, %v416
        %v420 = vmul.f32 %v369, 0.5
        %422 = vrot.lane.b32.xlu0 %v420, 126
        %v423 = vpop.permute.xlu0 %422
        %v425 = vsub.f32 %v369, %v423
        %v426 = vadd.f32 %v369, %v423
        %v427 = vsub.f32 %v418, %v415
        %v428 = vsub.f32 %v419, %v417
        %v429 = vmul.f32 %v427, %v428
        %v430 = vsub.f32 %v426, %v425
        %432 = vrot.lane.b32.xlu0 %v430, 127
        %v433 = vpop.permute.xlu0 %432
        %v435 = vmul.f32 %v430, %v433
        %v436 = vlaneseq
        %v437 = vshrl.u32 %v436, 7
        %v438 = vsub.s32 0, %v437
        %v439 = vrot.slane %v415, %v438
        %441 = vset.pattern.permute.xlu0 0
        %442 = vperm.xlu0 %441, %v425
        %v443 = vpop.permute.xlu0 %442
        %v445 = vmax.f32 %v439, %v443
        %v446 = vlaneseq
        %v447 = vshrl.u32 %v446, 7
        %v448 = vsub.s32 0, %v447
        %v449 = vrot.slane %v417, %v448
        %450 = vset.pattern.permute.xlu0 1
        %451 = vperm.xlu0 %450, %v425
        %v452 = vpop.permute.xlu0 %451
        %v454 = vmax.f32 %v449, %v452
        %v455 = vlaneseq
        %v456 = vshrl.u32 %v455, 7
        %v457 = vsub.s32 0, %v456
        %v458 = vrot.slane %v418, %v457
        %460 = vset.pattern.permute.xlu0 0
        %461 = vperm.xlu0 %460, %v426
        %v462 = vpop.permute.xlu0 %461
        %v464 = vmin.f32 %v458, %v462
        %v465 = vlaneseq
        %v466 = vshrl.u32 %v465, 7
        %v467 = vsub.s32 0, %v466
        %v468 = vrot.slane %v419, %v467
        %469 = vset.pattern.permute.xlu0 1
        %470 = vperm.xlu0 %469, %v426
        %v471 = vpop.permute.xlu0 %470
        %v473 = vmin.f32 %v468, %v471
        %v474 = vsub.f32 %v464, %v445
        %v475 = vmax.f32 %v474, 0.0
        %v476 = vsub.f32 %v473, %v454
        %v477 = vmax.f32 %v476, 0.0
        %v478 = vmul.f32 %v475, %v477
        %v479 = vlaneseq
        %v480 = vshrl.u32 %v479, 7
        %v481 = vsub.s32 0, %v480
        %v482 = vrot.slane %v429, %v481
        %484 = vset.pattern.permute.xlu0 0
        %485 = vperm.xlu0 %484, %v435
        %v486 = vpop.permute.xlu0 %485
        %v488 = vadd.f32 %v482, %v486
        %v489 = vsub.f32 %v488, %v478
        %v490 = vadd.f32 %v489, 1e-08
        %v491 = vrcp.pop %v490
        %v492 = vmul.f32 %v478, %v491
        %v493 = vmin.f32 %v439, %v443
        %v494 = vmin.f32 %v449, %v452
        %v495 = vmax.f32 %v458, %v462
        %v496 = vmax.f32 %v468, %v471
        %v497 = vsub.f32 %v495, %v493
        %v498 = vsub.f32 %v496, %v494
        %v499 = vmul.f32 %v497, %v498
        %v500 = vsub.f32 %v499, %v489
        %v501 = vadd.f32 %v499, 1e-08
        %v502 = vrcp.pop %v501
        %v503 = vmul.f32 %v500, %v502
        %v504 = vsub.f32 %v492, %v503
        %v505 = vmul.f32 %v413, 5.0
        %v506 = vmul.f32 %v364, 2.0
        %v508 = vlaneseq
        %v509 = vshrl.u32 %v508, 7
        %v510 = vsub.s32 0, %v509
        %v511 = vrot.slane %v506, %v510
        %v513 = vadd.f32 %v505, %v511
        %v514 = vmul.f32 %v504, 2.0
        %v515 = vsub.f32 %v513, %v514
        %v516 = vlaneseq
        %v517 = vand.u32 %v516, 127
        %v518 = vcvt.s32.f32 %v517
        %p519 = scmp.gt.s32.totalorder %s341, 0
        %s520 = scalar_select %p519, 1, 0
        %s521 = scvt.s32.f32 %s520
        %v522 = vadd.f32 %v515, 0.0
        %vm523 = vcmask 57344
        %v524 = vsel %vm523, %v522, inf
        %525 = vmin.xlane.f32.xlu0 %v524
        %v526 = vpop.xlane.xlu0 %525
        %vm527 = vcmp.le.f32.partialorder %v522, %v526
        %v528 = vsel %vm527, %v518, 8.0
        %v529 = vsel %vm523, %v528, inf
        %530 = vmin.xlane.f32.xlu0 %v529
        %v531 = vpop.xlane.xlu0 %530
        %vm532 = vcmp.eq.f32.partialorder %v518, %v531
        %v533 = vsel %vm532, 1, 0
        %v534 = vcvt.s32.f32 %v533
        %v535 = vadd.f32 %v534, 0.0
        %v536 = vstv %s521
        %v537 = vmul.f32 %v534, %v536
        %v538 = vadd.f32 %v537, 0.0
        %v539 = vmul.f32 %v534, %v413
        %v540 = vsel %vm523, %v539, 0.0
        %541 = vadd.xlane.f32.xlu0 %v540
        %v542 = vpop.xlane.xlu0 %541
        %v543 = vmul.f32 %v536, %v542
        %v544 = vadd.f32 %v543, 0.0
        %v545 = vmul.f32 %v534, %v504
        %v546 = vsel %vm523, %v545, 0.0
        %547 = vadd.xlane.f32.xlu0 %v546
        %v548 = vpop.xlane.xlu0 %547
        %v549 = vsub.f32 1.0, %v548
        %v550 = vmul.f32 %v536, %v549
        %v551 = vadd.f32 %v550, 0.0
        %p552 = scmp.gt.s32.totalorder %s341, 1
        %s553 = scalar_select %p552, 1, 0
        %s554 = scvt.s32.f32 %s553
        %v555 = vmul.f32 %v535, 1e+09
        %v557 = vrot.slane %v555, 7
        %v559 = vadd.f32 %v515, %v557
        %vm560 = vcmask 58369
        %v561 = vsel %vm560, %v559, inf
        %562 = vmin.xlane.f32.xlu0 %v561
        %v563 = vpop.xlane.xlu0 %562
        %vm564 = vcmp.le.f32.partialorder %v559, %v563
        %v565 = vsel %vm564, %v518, 8.0
        %v566 = vsel %vm560, %v565, inf
        %567 = vmin.xlane.f32.xlu0 %v566
        %v568 = vpop.xlane.xlu0 %567
        %vm569 = vcmp.eq.f32.partialorder %v518, %v568
        %v570 = vsel %vm569, 1, 0
        %v571 = vcvt.s32.f32 %v570
        %v572 = vstv %s554
        %v573 = vmul.f32 %v571, %v572
        %v575 = vrot.slane %v573, 1
        %v577 = vadd.f32 %v538, %v575
        %v578 = vmul.f32 %v571, %v413
        %v579 = vsel %vm560, %v578, 0.0
        %580 = vadd.xlane.f32.xlu0 %v579
        %v581 = vpop.xlane.xlu0 %580
        %v582 = vmul.f32 %v572, %v581
        %v584 = vrot.slane %v582, 1
        %v586 = vadd.f32 %v544, %v584
        %v587 = vmul.f32 %v571, %v504
        %v588 = vsel %vm560, %v587, 0.0
        %589 = vadd.xlane.f32.xlu0 %v588
        %v590 = vpop.xlane.xlu0 %589
        %v591 = vsub.f32 1.0, %v590
        %v592 = vmul.f32 %v572, %v591
        %v594 = vrot.slane %v592, 1
        %v596 = vadd.f32 %v551, %v594
        %v597 = vmax.f32 %v342, 0.0
        %v598 = vmul.f32 %v342, %v577
        %v599 = vsub.f32 %v597, %v598
        %v600 = vand.u32 2147483647, %v342
        %v601 = vsub.f32 0.0, %v600
        %v602 = vmul.f32 %v601, 1.442695
        %v603 = vpow.pop %v602
        %v604 = vadd.f32 %v603, 1.0
        %v605 = vlog2.pop %v604
        %v606 = vmul.f32 %v605, 0.6931472
        %v607 = vadd.f32 %v599, %v606
        %v608 = vmul.f32 %v348, %v577
        %v609 = vsub.f32 1.0, %v577
        %v610 = vmul.f32 %v351, %v609
        %v611 = vadd.f32 %v608, %v610
        %v612 = vmul.f32 %v577, 0.25
        %v613 = vmul.f32 %v609, 0.75
        %v614 = vadd.f32 %v612, %v613
        %v615 = vmul.f32 %v614, %v607
        %v616 = vsub.f32 1.0, %v611
        %v617 = vmul.f32 %v616, %v616
        %v618 = vmul.f32 %v615, %v617
        %v619 = vld [vmem:[%s326] sm:$0x1]
        %v620 = vsel %vm523, %v618, 0.0
        %621 = vadd.xlane.f32.xlu0 %v620
        %v622 = vpop.xlane.xlu0 %621
        %v623 = vadd.f32 %v619, %v622
        %vm624 = vcmask 0
        %625 = vst.msk [vmem:[%s326] sm:$0x1] %vm624, %v623
        %v626 = vld [vmem:[%s329] sm:$0x1]
        %v627 = vadd.f32 %v626, %v586
        %628 = vst.msk [vmem:[%s329] sm:$0x1] %vm624, %v627
        %v629 = vld [vmem:[%s332] sm:$0x1]
        %v630 = vadd.f32 %v629, %v596
        %631 = vst.msk [vmem:[%s332] sm:$0x1] %vm624, %v630
        %p632 = scmp.lt.s32.totalorder %s34, 2
        %s633 = scalar_select %p632, %s34, 2
        %s634 = scalar_lea.vmem %s4, %s633
        %p635 = scmp.lt.s32.totalorder %s34, 2
        %s636 = scalar_select %p635, %s34, 2
        %s637 = scalar_lea.vmem %s5, %s636
        %p638 = scmp.lt.s32.totalorder %s34, 2
        %s639 = scalar_select %p638, %s34, 2
        %s640 = scalar_lea.vmem %s6, %s639
        // Predicated region
        $region45: #{_classwise_losses.1} parent=31 // pred_check
          %p641 = pneg %p142
        $region46: #{_classwise_losses.1} parent=31 // pred_check_branch
          %643 = sbr.rel (%p641) target = $region48
        $region47: #{_classwise_losses.1} parent=31 // pred_region
          _
        $region48: #{_classwise_losses.1} parent=31 // pred_fallthru
          _
        // Predicated region
        $region49: #{_classwise_losses.1} parent=31 // pred_check
          %p644 = pneg %p168
        $region50: #{_classwise_losses.1} parent=31 // pred_check_branch
          %646 = sbr.rel (%p644) target = $region52
        $region51: #{_classwise_losses.1} parent=31 // pred_region
          _
        $region52: #{_classwise_losses.1} parent=31 // pred_fallthru
          _
        // Predicated region
        $region53: #{_classwise_losses.1} parent=31 // pred_check
          %p647 = pneg %p194
        $region54: #{_classwise_losses.1} parent=31 // pred_check_branch
          %649 = sbr.rel (%p647) target = $region56
        $region55: #{_classwise_losses.1} parent=31 // pred_region
          _
        $region56: #{_classwise_losses.1} parent=31 // pred_fallthru
          _
      $region32: #{_classwise_losses.1} parent=5 // pred_fallthru
        _
      %p650 = scmp.le.s32.totalorder 2, %s25
      // Predicated region
      $region57: #{_classwise_losses.1} parent=5 // pred_check
        %p651 = pneg %p650
      $region58: #{_classwise_losses.1} parent=5 // pred_check_branch
        %653 = sbr.rel (%p651) target = $region60
      $region59: #{_classwise_losses.1} parent=5 // pred_region
        %s654 = ssub.s32 %s25, 2
        // Predicated region
        $region61: #{_classwise_losses.1} parent=59 // pred_check
          %p655 = pneg %p148
        $region62: #{_classwise_losses.1} parent=59 // pred_check_branch
          %657 = sbr.rel (%p655) target = $region64
        $region63: #{_classwise_losses.1} parent=59 // pred_region
          %p658 = scmp.lt.s32.totalorder %s36, 2
          %s659 = scalar_select %p658, %s36, 2
          %s660 = scalar_lea.vmem %s4, %s659
        $region64: #{_classwise_losses.1} parent=59 // pred_fallthru
          _
        // Predicated region
        $region65: #{_classwise_losses.1} parent=59 // pred_check
          %p661 = pneg %p174
        $region66: #{_classwise_losses.1} parent=59 // pred_check_branch
          %663 = sbr.rel (%p661) target = $region68
        $region67: #{_classwise_losses.1} parent=59 // pred_region
          %p664 = scmp.lt.s32.totalorder %s36, 2
          %s665 = scalar_select %p664, %s36, 2
          %s666 = scalar_lea.vmem %s5, %s665
        $region68: #{_classwise_losses.1} parent=59 // pred_fallthru
          _
        // Predicated region
        $region69: #{_classwise_losses.1} parent=59 // pred_check
          %p667 = pneg %p200
        $region70: #{_classwise_losses.1} parent=59 // pred_check_branch
          %669 = sbr.rel (%p667) target = $region72
        $region71: #{_classwise_losses.1} parent=59 // pred_region
          %p670 = scmp.lt.s32.totalorder %s36, 2
          %s671 = scalar_select %p670, %s36, 2
          %s672 = scalar_lea.vmem %s6, %s671
        $region72: #{_classwise_losses.1} parent=59 // pred_fallthru
          _
      $region60: #{_classwise_losses.1} parent=5 // pred_fallthru
        _
    $region6: #{_classwise_losses.1} parent=1 // loop_footer
      %s29 = sadd.s32 1, %s25
    $region7: #{_classwise_losses.1} parent=1 // loop_footer_branch
      %24 = sbr.rel target = $region3
    $region8: #{_classwise_losses.1} parent=1 // loop_exit
      _
    %673 = vsyncpa [#allocation5], 1
    %s674 = scalar_lea.sflag [#allocation5], 1
    %675 = vsyncpa %s674, 1
    %676 = vsyncpa [#allocation7], 1
    %s677 = scalar_lea.sflag [#allocation7], 1
    %678 = vsyncpa %s677, 1

</llo_original>
